<compile_context>
chip_gen: v7x
topology: tpu7x:2x2x1
jax: 0.10.0
libtpu: 0.0.40
codegen_flags: <defaults>
</compile_context>

<pallas_src>
import functools

import jax
import jax.numpy as jnp
from jax.experimental import pallas as pl
from jax.experimental.pallas import tpu as pltpu


def _relu(v):
    return jnp.maximum(v, 0.0)


def _round_up(n, m):
    return ((n + m - 1) // m) * m


def mlp_spatial_filter_kernel(
    xt_ref,
    w11_ref, b11_ref,
    w12_ref, b12_ref,
    w2123_ref, b2123_ref,   # fused fc21 | fc23 (output axis concatenated)
    w22_ref, b22_ref,
    wv_ref, bv_ref,
    value_ref, act_ref,
    *, num_hidden, sub_tile, num_sub,
):
    # Weights are PyTorch-layout (out, in) and are the matmul LHS; data is
    # (features, rows) with rows on the lane axis -> all stores lane-dense.
    w11 = w11_ref[...]
    w12 = w12_ref[...]
    w2123 = w2123_ref[...]
    w22 = w22_ref[...]
    wv = wv_ref[...]
    b11 = b11_ref[...]
    b12 = b12_ref[...]
    b2123 = b2123_ref[...]
    b22 = b22_ref[...]
    bv = bv_ref[...]

    def mm(w, a):
        # Operand dtype follows the weight dtype (f32 or bf16); accumulate in f32.
        return jnp.dot(w, a.astype(w.dtype), preferred_element_type=jnp.float32)

    H = num_hidden

    # Static sub-chunks along the lane (row) axis bound the live vreg set per
    # chunk (no spills); offsets are Python ints -> zero-cost static ref views.
    for c in range(num_sub):
        lo = c * sub_tile
        hi = lo + sub_tile

        x_in = xt_ref[:, lo:hi]                      # (S, sub), f32 or bf16
        x_res = x_in.astype(jnp.float32)

        # Block 1: x1 = relu(fc12(relu(fc11(x))) + x)
        h1 = _relu(mm(w11, x_in) + b11)              # (S, sub)
        x1 = _relu(mm(w12, h1) + b12 + x_res)        # (S, sub)

        # Block 2: fc21/fc23 share the LHS -> one fused matmul, sublane split.
        t = mm(w2123, x1) + b2123                    # (2H, sub)
        h2 = _relu(t[:H, :])                         # fc21 part
        skip = t[H:, :]                              # fc23 part
        x2 = _relu(mm(w22, h2) + b22 + skip)         # (H, sub)

        # value head + its activation (both lane-dense stores).
        v = mm(wv, x2) + bv                          # (H, sub)
        value_ref[:, lo:hi] = v.astype(value_ref.dtype)
        act_ref[:, lo:hi] = _relu(v).astype(act_ref.dtype)


def mlp_spatial_filter(x, params, *, row_tile=512, sub_tile=128,
                       use_bf16_matmul=False):
    """x: (batch, seq, num_sensor) float32.  Returns dict like the torch module.

    params are PyTorch-layout: weights (out_features, in_features), biases (out,).
    """
    (w11, b11, w12, b12, w21, b21, w22, b22, w23, b23, wv, bv) = params
    num_sensor = w11.shape[1]
    num_hidden = wv.shape[0]

    batch, seq, s = x.shape
    assert s == num_sensor
    n_rows = batch * seq

    # Rows on the lane axis: kernel input is (num_sensor, n_rows).
    xt = jnp.transpose(x.reshape(n_rows, num_sensor), (1, 0))

    # Fuse fc21 / fc23 (same LHS) along the output axis -> (2H, S) weight.
    w2123 = jnp.concatenate([w21, w23], axis=0)
    b2123 = jnp.concatenate([b21, b23], axis=0)

    mm_dtype = jnp.bfloat16 if use_bf16_matmul else jnp.float32
    xt = xt.astype(mm_dtype)
    w11c, w12c, w2123c, w22c, wvc = (
        w.astype(mm_dtype) for w in (w11, w12, w2123, w22, wv)
    )
    # Biases as (out, 1) columns (broadcast over lanes), always f32.
    b11c, b12c, b2123c, b22c, bvc = (
        b.reshape(-1, 1).astype(jnp.float32) for b in (b11, b12, b2123, b22, bv)
    )

    # Lane tile: multiple of the 128-lane sub-chunk; capped so the grid has
    # >= 2 steps whenever n_rows allows (v7x dual TensorCore).  No padding or
    # output slicing: pl.cdiv grid + exact out_shape handles the ragged edge.
    sub_tile = max(128, _round_up(sub_tile, 128))
    tm = max(sub_tile,
             min(_round_up(row_tile, sub_tile),
                 _round_up(pl.cdiv(n_rows, 2), sub_tile)))
    num_sub = tm // sub_tile
    grid = (pl.cdiv(n_rows, tm),)

    def full_spec(shape):
        return pl.BlockSpec(shape, lambda i: (0,) * len(shape))

    in_specs = [
        pl.BlockSpec((num_sensor, tm), lambda i: (0, i)),     # x_t lane tiles
        full_spec(w11c.shape), full_spec(b11c.shape),
        full_spec(w12c.shape), full_spec(b12c.shape),
        full_spec(w2123c.shape), full_spec(b2123c.shape),
        full_spec(w22c.shape), full_spec(b22c.shape),
        full_spec(wvc.shape), full_spec(bvc.shape),
    ]
    out_specs = (
        pl.BlockSpec((num_hidden, tm), lambda i: (0, i)),     # value (transposed)
        pl.BlockSpec((num_hidden, tm), lambda i: (0, i)),     # value_activation
    )
    out_shape = (
        jax.ShapeDtypeStruct((num_hidden, n_rows), jnp.float32),
        jax.ShapeDtypeStruct((num_hidden, n_rows), jnp.float32),
    )

    # Advisory cost estimate for XLA's scheduler.
    flops = 2 * n_rows * (
        num_sensor * num_sensor          # fc11
        + num_sensor * num_sensor        # fc12
        + num_sensor * 2 * num_hidden    # fused fc21|fc23
        + num_hidden * num_hidden        # fc22
        + num_hidden * num_hidden        # value
    )
    param_arrays = (w11c, b11c, w12c, b12c, w2123c, b2123c, w22c, b22c, wvc, bvc)
    weight_bytes = sum(int(a.size) * jnp.dtype(a.dtype).itemsize for a in param_arrays)
    x_itemsize = jnp.dtype(mm_dtype).itemsize
    bytes_accessed = (
        n_rows * num_sensor * x_itemsize          # x_t read
        + 2 * n_rows * num_hidden * 4             # value + value_activation writes
        + weight_bytes
    )
    cost = pl.CostEstimate(flops=flops, transcendentals=0,
                           bytes_accessed=bytes_accessed)

    kernel = functools.partial(
        mlp_spatial_filter_kernel,
        num_hidden=num_hidden, sub_tile=sub_tile, num_sub=num_sub,
    )

    value_t, act_t = pl.pallas_call(
        kernel,
        grid_spec=pltpu.PrefetchScalarGridSpec(
            num_scalar_prefetch=0,
            grid=grid,
            in_specs=in_specs,
            out_specs=out_specs,
        ),
        out_shape=out_shape,
        compiler_params=pltpu.CompilerParams(
            dimension_semantics=("parallel",),
        ),
        cost_estimate=cost,
    )(xt, w11c, b11c, w12c, b12c, w2123c, b2123c, w22c, b22c, wvc, bvc)

    value = jnp.transpose(value_t, (1, 0)).reshape(batch, seq, num_hidden)
    value_act = jnp.transpose(act_t, (1, 0)).reshape(batch, seq, num_hidden)
    return {"value": value, "value_activation": value_act}


def make_params(num_sensor, num_hidden):
    """Deterministic synthetic params, PyTorch layout: W (out, in); b (out,)."""
    key = jax.random.PRNGKey(0)
    ks = jax.random.split(key, 12)

    def lin(kw, kb, fan_in, fan_out):
        bound = 1.0 / jnp.sqrt(jnp.float32(fan_in))
        w = jax.random.uniform(kw, (fan_out, fan_in), jnp.float32, -bound, bound)
        b = jax.random.uniform(kb, (fan_out,), jnp.float32, -bound, bound)
        return w, b

    w11, b11 = lin(ks[0], ks[1], num_sensor, num_sensor)    # fc11
    w12, b12 = lin(ks[2], ks[3], num_sensor, num_sensor)    # fc12
    w21, b21 = lin(ks[4], ks[5], num_sensor, num_hidden)    # fc21
    w22, b22 = lin(ks[6], ks[7], num_hidden, num_hidden)    # fc22
    w23, b23 = lin(ks[8], ks[9], num_sensor, num_hidden)    # fc23
    wv, bv = lin(ks[10], ks[11], num_hidden, num_hidden)    # value
    return (w11, b11, w12, b12, w21, b21, w22, b22, w23, b23, wv, bv)


def reference(x, params):
    """Pure-JAX mirror of the torch forward (activation = ReLU)."""
    (w11, b11, w12, b12, w21, b21, w22, b22, w23, b23, wv, bv) = params
    act = _relu
    h = act(x @ w11.T + b11)
    x1 = act(h @ w12.T + b12 + x)
    h2 = act(x1 @ w21.T + b21)
    x2 = act(h2 @ w22.T + b22 + (x1 @ w23.T + b23))
    v = x2 @ wv.T + bv
    return {"value": v, "value_activation": act(v)}


if __name__ == "__main__":
    num_sensor = 16
    num_hidden = 32
    batch, seq = 2, 8

    key = jax.random.PRNGKey(0)
    x = jax.random.normal(key, (batch, seq, num_sensor), jnp.float32)
    params = make_params(num_sensor, num_hidden)

    out = mlp_spatial_filter(x, params)
    jax.block_until_ready(out)

    ref = reference(x, params)
    assert jnp.allclose(out["value"], ref["value"], atol=1e-5, rtol=1e-5)
    assert jnp.allclose(
        out["value_activation"], ref["value_activation"], atol=1e-5, rtol=1e-5
    )

    # Larger, non-tile-multiple shape: exercises the pl.cdiv ragged last block
    # (no wrapper pad/slice) and a multi-step parallel grid.
    x2 = jax.random.normal(jax.random.PRNGKey(1), (3, 1000, num_sensor), jnp.float32)
    out2 = mlp_spatial_filter(x2, params)
    jax.block_until_ready(out2)
    ref2 = reference(x2, params)
    assert jnp.allclose(out2["value"], ref2["value"], atol=1e-4, rtol=1e-4)
    assert jnp.allclose(
        out2["value_activation"], ref2["value_activation"], atol=1e-4, rtol=1e-4
    )

    # Optional bf16 matmul-operand path (f32 accumulate); looser tolerance.
    out3 = mlp_spatial_filter(x2, params, use_bf16_matmul=True)
    jax.block_until_ready(out3)
    assert jnp.allclose(out3["value"], ref2["value"], atol=1e-1, rtol=1e-1)
    assert jnp.allclose(
        out3["value_activation"], ref2["value_activation"], atol=1e-1, rtol=1e-1
    )

    print("KERNEL_OK")
</pallas_src>

<mosaic_0001>
module attributes {stable_mosaic.version = 11 : i64} {
  func.func @mlp_spatial_filter_kernel(%arg0: i32, %arg1: memref<16x128xf32, #tpu.memory_space<vmem>>, %arg2: memref<16x16xf32, #tpu.memory_space<vmem>>, %arg3: memref<16x1xf32, #tpu.memory_space<vmem>>, %arg4: memref<16x16xf32, #tpu.memory_space<vmem>>, %arg5: memref<16x1xf32, #tpu.memory_space<vmem>>, %arg6: memref<64x16xf32, #tpu.memory_space<vmem>>, %arg7: memref<64x1xf32, #tpu.memory_space<vmem>>, %arg8: memref<32x32xf32, #tpu.memory_space<vmem>>, %arg9: memref<32x1xf32, #tpu.memory_space<vmem>>, %arg10: memref<32x32xf32, #tpu.memory_space<vmem>>, %arg11: memref<32x1xf32, #tpu.memory_space<vmem>>, %arg12: memref<32x128xf32, #tpu.memory_space<vmem>>, %arg13: memref<32x128xf32, #tpu.memory_space<vmem>>) attributes {dimension_semantics = [#tpu.dimension_semantics<parallel>], iteration_bounds = array<i64: 1>, scalar_prefetch = 0 : i64, scratch_operands = 0 : i64, tpu.core_type = #tpu.core_type<tc>, window_params = [{transform_indices = @transform_0, window_bounds = array<i64: 16, 128>}, {pipeline_mode = #tpu.pipeline_mode<synchronous>, transform_indices = @transform_1, window_bounds = array<i64: 16, 16>}, {pipeline_mode = #tpu.pipeline_mode<synchronous>, transform_indices = @transform_2, window_bounds = array<i64: 16, 1>}, {pipeline_mode = #tpu.pipeline_mode<synchronous>, transform_indices = @transform_3, window_bounds = array<i64: 16, 16>}, {pipeline_mode = #tpu.pipeline_mode<synchronous>, transform_indices = @transform_4, window_bounds = array<i64: 16, 1>}, {pipeline_mode = #tpu.pipeline_mode<synchronous>, transform_indices = @transform_5, window_bounds = array<i64: 64, 16>}, {pipeline_mode = #tpu.pipeline_mode<synchronous>, transform_indices = @transform_6, window_bounds = array<i64: 64, 1>}, {pipeline_mode = #tpu.pipeline_mode<synchronous>, transform_indices = @transform_7, window_bounds = array<i64: 32, 32>}, {pipeline_mode = #tpu.pipeline_mode<synchronous>, transform_indices = @transform_8, window_bounds = array<i64: 32, 1>}, {pipeline_mode = #tpu.pipeline_mode<synchronous>, transform_indices = @transform_9, window_bounds = array<i64: 32, 32>}, {pipeline_mode = #tpu.pipeline_mode<synchronous>, transform_indices = @transform_10, window_bounds = array<i64: 32, 1>}, {transform_indices = @transform_11, window_bounds = array<i64: 32, 128>}, {transform_indices = @transform_12, window_bounds = array<i64: 32, 128>}]} {
    %c0 = arith.constant 0 : index
    %c0_0 = arith.constant 0 : index
    %0 = vector.load %arg2[%c0, %c0_0] : memref<16x16xf32, #tpu.memory_space<vmem>>, vector<16x16xf32>
    %c0_1 = arith.constant 0 : index
    %c0_2 = arith.constant 0 : index
    %1 = vector.load %arg4[%c0_1, %c0_2] : memref<16x16xf32, #tpu.memory_space<vmem>>, vector<16x16xf32>
    %c0_3 = arith.constant 0 : index
    %c0_4 = arith.constant 0 : index
    %2 = vector.load %arg6[%c0_3, %c0_4] : memref<64x16xf32, #tpu.memory_space<vmem>>, vector<64x16xf32>
    %c0_5 = arith.constant 0 : index
    %c0_6 = arith.constant 0 : index
    %3 = vector.load %arg8[%c0_5, %c0_6] : memref<32x32xf32, #tpu.memory_space<vmem>>, vector<32x32xf32>
    %c0_7 = arith.constant 0 : index
    %c0_8 = arith.constant 0 : index
    %4 = vector.load %arg10[%c0_7, %c0_8] : memref<32x32xf32, #tpu.memory_space<vmem>>, vector<32x32xf32>
    %c0_9 = arith.constant 0 : index
    %c0_10 = arith.constant 0 : index
    %5 = vector.load %arg3[%c0_9, %c0_10] : memref<16x1xf32, #tpu.memory_space<vmem>>, vector<16x1xf32>
    %c0_11 = arith.constant 0 : index
    %c0_12 = arith.constant 0 : index
    %6 = vector.load %arg5[%c0_11, %c0_12] : memref<16x1xf32, #tpu.memory_space<vmem>>, vector<16x1xf32>
    %c0_13 = arith.constant 0 : index
    %c0_14 = arith.constant 0 : index
    %7 = vector.load %arg7[%c0_13, %c0_14] : memref<64x1xf32, #tpu.memory_space<vmem>>, vector<64x1xf32>
    %c0_15 = arith.constant 0 : index
    %c0_16 = arith.constant 0 : index
    %8 = vector.load %arg9[%c0_15, %c0_16] : memref<32x1xf32, #tpu.memory_space<vmem>>, vector<32x1xf32>
    %c0_17 = arith.constant 0 : index
    %c0_18 = arith.constant 0 : index
    %9 = vector.load %arg11[%c0_17, %c0_18] : memref<32x1xf32, #tpu.memory_space<vmem>>, vector<32x1xf32>
    %c0_19 = arith.constant 0 : index
    %c0_20 = arith.constant 0 : index
    %10 = vector.load %arg1[%c0_19, %c0_20] : memref<16x128xf32, #tpu.memory_space<vmem>>, vector<16x128xf32>
    %cst = arith.constant dense<0.000000e+00> : vector<16x128xf32>
    %11 = tpu.matmul %0, %10, %cst {dimension_numbers = #tpu.dot_dimension_numbers<[1], [0], [0], [1], [0, 0, 1, 1], [], []>} : vector<16x16xf32>, vector<16x128xf32>, vector<16x128xf32> -> vector<16x128xf32>
    %12 = vector.broadcast %5 : vector<16x1xf32> to vector<16x128xf32>
    %13 = arith.addf %11, %12 : vector<16x128xf32>
    %cst_21 = arith.constant 0.000000e+00 : f32
    %14 = vector.broadcast %cst_21 : f32 to vector<16x128xf32>
    %15 = arith.maximumf %13, %14 : vector<16x128xf32>
    %cst_22 = arith.constant dense<0.000000e+00> : vector<16x128xf32>
    %16 = tpu.matmul %1, %15, %cst_22 {dimension_numbers = #tpu.dot_dimension_numbers<[1], [0], [0], [1], [0, 0, 1, 1], [], []>} : vector<16x16xf32>, vector<16x128xf32>, vector<16x128xf32> -> vector<16x128xf32>
    %17 = vector.broadcast %6 : vector<16x1xf32> to vector<16x128xf32>
    %18 = arith.addf %16, %17 : vector<16x128xf32>
    %19 = arith.addf %18, %10 : vector<16x128xf32>
    %cst_23 = arith.constant 0.000000e+00 : f32
    %20 = vector.broadcast %cst_23 : f32 to vector<16x128xf32>
    %21 = arith.maximumf %19, %20 : vector<16x128xf32>
    %cst_24 = arith.constant dense<0.000000e+00> : vector<64x128xf32>
    %22 = tpu.matmul %2, %21, %cst_24 {dimension_numbers = #tpu.dot_dimension_numbers<[1], [0], [0], [1], [0, 0, 1, 1], [], []>} : vector<64x16xf32>, vector<16x128xf32>, vector<64x128xf32> -> vector<64x128xf32>
    %23 = vector.broadcast %7 : vector<64x1xf32> to vector<64x128xf32>
    %24 = arith.addf %22, %23 : vector<64x128xf32>
    %25 = vector.extract_strided_slice %24 {offsets = [0, 0], sizes = [32, 128], strides = [1, 1]} : vector<64x128xf32> to vector<32x128xf32>
    %cst_25 = arith.constant 0.000000e+00 : f32
    %26 = vector.broadcast %cst_25 : f32 to vector<32x128xf32>
    %27 = arith.maximumf %25, %26 : vector<32x128xf32>
    %28 = vector.extract_strided_slice %24 {offsets = [32, 0], sizes = [32, 128], strides = [1, 1]} : vector<64x128xf32> to vector<32x128xf32>
    %cst_26 = arith.constant dense<0.000000e+00> : vector<32x128xf32>
    %29 = tpu.matmul %3, %27, %cst_26 {dimension_numbers = #tpu.dot_dimension_numbers<[1], [0], [0], [1], [0, 0, 1, 1], [], []>} : vector<32x32xf32>, vector<32x128xf32>, vector<32x128xf32> -> vector<32x128xf32>
    %30 = vector.broadcast %8 : vector<32x1xf32> to vector<32x128xf32>
    %31 = arith.addf %29, %30 : vector<32x128xf32>
    %32 = arith.addf %31, %28 : vector<32x128xf32>
    %cst_27 = arith.constant 0.000000e+00 : f32
    %33 = vector.broadcast %cst_27 : f32 to vector<32x128xf32>
    %34 = arith.maximumf %32, %33 : vector<32x128xf32>
    %cst_28 = arith.constant dense<0.000000e+00> : vector<32x128xf32>
    %35 = tpu.matmul %4, %34, %cst_28 {dimension_numbers = #tpu.dot_dimension_numbers<[1], [0], [0], [1], [0, 0, 1, 1], [], []>} : vector<32x32xf32>, vector<32x128xf32>, vector<32x128xf32> -> vector<32x128xf32>
    %36 = vector.broadcast %9 : vector<32x1xf32> to vector<32x128xf32>
    %37 = arith.addf %35, %36 : vector<32x128xf32>
    %c0_29 = arith.constant 0 : index
    %c0_30 = arith.constant 0 : index
    %38 = vector.load %arg12[%c0_29, %c0_30] : memref<32x128xf32, #tpu.memory_space<vmem>>, vector<32x128xf32>
    tpu.vector_store %arg12[%c0_29, %c0_30], %37 {strides = array<i32>} : memref<32x128xf32, #tpu.memory_space<vmem>>, vector<32x128xf32>,
    %cst_31 = arith.constant 0.000000e+00 : f32
    %39 = vector.broadcast %cst_31 : f32 to vector<32x128xf32>
    %40 = arith.maximumf %37, %39 : vector<32x128xf32>
    %c0_32 = arith.constant 0 : index
    %c0_33 = arith.constant 0 : index
    %41 = vector.load %arg13[%c0_32, %c0_33] : memref<32x128xf32, #tpu.memory_space<vmem>>, vector<32x128xf32>
    tpu.vector_store %arg13[%c0_32, %c0_33], %40 {strides = array<i32>} : memref<32x128xf32, #tpu.memory_space<vmem>>, vector<32x128xf32>,
    return
  }
  func.func @transform_0(%arg0: i32) -> (i32, i32) {
    %c0_i32 = arith.constant 0 : i32
    %c0_i32_0 = arith.constant 0 : i32
    return %c0_i32, %arg0 : i32, i32
  }
  func.func @transform_1(%arg0: i32) -> (i32, i32) {
    %c0_i32 = arith.constant 0 : i32
    %c0_i32_0 = arith.constant 0 : i32
    %c0_i32_1 = arith.constant 0 : i32
    return %c0_i32, %c0_i32_0 : i32, i32
  }
  func.func @transform_2(%arg0: i32) -> (i32, i32) {
    %c0_i32 = arith.constant 0 : i32
    %c0_i32_0 = arith.constant 0 : i32
    %c0_i32_1 = arith.constant 0 : i32
    return %c0_i32, %c0_i32_0 : i32, i32
  }
  func.func @transform_3(%arg0: i32) -> (i32, i32) {
    %c0_i32 = arith.constant 0 : i32
    %c0_i32_0 = arith.constant 0 : i32
    %c0_i32_1 = arith.constant 0 : i32
    return %c0_i32, %c0_i32_0 : i32, i32
  }
  func.func @transform_4(%arg0: i32) -> (i32, i32) {
    %c0_i32 = arith.constant 0 : i32
    %c0_i32_0 = arith.constant 0 : i32
    %c0_i32_1 = arith.constant 0 : i32
    return %c0_i32, %c0_i32_0 : i32, i32
  }
  func.func @transform_5(%arg0: i32) -> (i32, i32) {
    %c0_i32 = arith.constant 0 : i32
    %c0_i32_0 = arith.constant 0 : i32
    %c0_i32_1 = arith.constant 0 : i32
    return %c0_i32, %c0_i32_0 : i32, i32
  }
  func.func @transform_6(%arg0: i32) -> (i32, i32) {
    %c0_i32 = arith.constant 0 : i32
    %c0_i32_0 = arith.constant 0 : i32
    %c0_i32_1 = arith.constant 0 : i32
    return %c0_i32, %c0_i32_0 : i32, i32
  }
  func.func @transform_7(%arg0: i32) -> (i32, i32) {
    %c0_i32 = arith.constant 0 : i32
    %c0_i32_0 = arith.constant 0 : i32
    %c0_i32_1 = arith.constant 0 : i32
    return %c0_i32, %c0_i32_0 : i32, i32
  }
  func.func @transform_8(%arg0: i32) -> (i32, i32) {
    %c0_i32 = arith.constant 0 : i32
    %c0_i32_0 = arith.constant 0 : i32
    %c0_i32_1 = arith.constant 0 : i32
    return %c0_i32, %c0_i32_0 : i32, i32
  }
  func.func @transform_9(%arg0: i32) -> (i32, i32) {
    %c0_i32 = arith.constant 0 : i32
    %c0_i32_0 = arith.constant 0 : i32
    %c0_i32_1 = arith.constant 0 : i32
    return %c0_i32, %c0_i32_0 : i32, i32
  }
  func.func @transform_10(%arg0: i32) -> (i32, i32) {
    %c0_i32 = arith.constant 0 : i32
    %c0_i32_0 = arith.constant 0 : i32
    %c0_i32_1 = arith.constant 0 : i32
    return %c0_i32, %c0_i32_0 : i32, i32
  }
  func.func @transform_11(%arg0: i32) -> (i32, i32) {
    %c0_i32 = arith.constant 0 : i32
    %c0_i32_0 = arith.constant 0 : i32
    return %c0_i32, %arg0 : i32, i32
  }
  func.func @transform_12(%arg0: i32) -> (i32, i32) {
    %c0_i32 = arith.constant 0 : i32
    %c0_i32_0 = arith.constant 0 : i32
    return %c0_i32, %arg0 : i32, i32
  }
}

</mosaic_0001>

<llo_original>
// kernel: tpu_custom_call.1
$region0: #{tpu_custom_call.1}
  #allocation0 [shape = 'u32[]', space=smem, size = 0x4, offset = 0x4, fixed_abs, tag = 'smem constant byte address 0x4 - core index']
  #allocation1 [shape = 'u32[144,128]{1,0:T(1,128)}', space=vmem, size = 0x12000, scoped, tag = 'internal scratch']
  %s0 = inlined_call_operand.vmem [shape: f32[16,16], index: 0, kind: input, shape index: {}]
  %s1 = inlined_call_operand.vmem [shape: f32[16,16], index: 1, kind: input, shape index: {}]
  %s2 = inlined_call_operand.vmem [shape: f32[16,1], index: 2, kind: input, shape index: {}]
  %s3 = inlined_call_operand.vmem [shape: f32[16,16], index: 3, kind: input, shape index: {}]
  %s4 = inlined_call_operand.vmem [shape: f32[16,1], index: 4, kind: input, shape index: {}]
  %s5 = inlined_call_operand.vmem [shape: f32[64,16], index: 5, kind: input, shape index: {}]
  %s6 = inlined_call_operand.vmem [shape: f32[64,1], index: 6, kind: input, shape index: {}]
  %s7 = inlined_call_operand.vmem [shape: f32[32,32], index: 7, kind: input, shape index: {}]
  %s8 = inlined_call_operand.vmem [shape: f32[32,1], index: 8, kind: input, shape index: {}]
  %s9 = inlined_call_operand.vmem [shape: f32[32,32], index: 9, kind: input, shape index: {}]
  %s10 = inlined_call_operand.vmem [shape: f32[32,1], index: 10, kind: input, shape index: {}]
  %s11 = inlined_call_operand.vmem [shape: f32[32,16], index: 11, kind: output, shape index: {0}]
  %s12 = inlined_call_operand.vmem [shape: f32[32,16], index: 12, kind: output, shape index: {1}]
  %13 = xla_tuple %s11, %s12
  %s14 = sld [smem:[#allocation0]]
  $region62: #{tpu_custom_call.1} parent=0
    _
  %s16 = ssub.s32 1, %s14
  %s17 = scalar_select 0, %s16, %s14
  // Predicated region
  $region2: #{tpu_custom_call.1} parent=0 // pred_check
    _
  $region3: #{tpu_custom_call.1} parent=0 // pred_check_branch
    %19 = sbr.rel (0) target = $region5
  $region4: #{tpu_custom_call.1} parent=0 // pred_region
    _
  $region5: #{tpu_custom_call.1} parent=0 // pred_fallthru
    _
  // Predicated region
  $region6: #{tpu_custom_call.1} parent=0 // pred_check
    _
  $region7: #{tpu_custom_call.1} parent=0 // pred_check_branch
    %21 = sbr.rel (0) target = $region9
  $region8: #{tpu_custom_call.1} parent=0 // pred_region
    _
  $region9: #{tpu_custom_call.1} parent=0 // pred_fallthru
    _
  // Predicated region
  $region10: #{tpu_custom_call.1} parent=0 // pred_check
    _
  $region11: #{tpu_custom_call.1} parent=0 // pred_check_branch
    %23 = sbr.rel (0) target = $region13
  $region12: #{tpu_custom_call.1} parent=0 // pred_region
    _
  $region13: #{tpu_custom_call.1} parent=0 // pred_fallthru
    _
  // Predicated region
  $region14: #{tpu_custom_call.1} parent=0 // pred_check
    _
  $region15: #{tpu_custom_call.1} parent=0 // pred_check_branch
    %25 = sbr.rel (0) target = $region17
  $region16: #{tpu_custom_call.1} parent=0 // pred_region
    _
  $region17: #{tpu_custom_call.1} parent=0 // pred_fallthru
    _
  // Predicated region
  $region18: #{tpu_custom_call.1} parent=0 // pred_check
    _
  $region19: #{tpu_custom_call.1} parent=0 // pred_check_branch
    %27 = sbr.rel (0) target = $region21
  $region20: #{tpu_custom_call.1} parent=0 // pred_region
    _
  $region21: #{tpu_custom_call.1} parent=0 // pred_fallthru
    _
  // Predicated region
  $region22: #{tpu_custom_call.1} parent=0 // pred_check
    _
  $region23: #{tpu_custom_call.1} parent=0 // pred_check_branch
    %29 = sbr.rel (0) target = $region25
  $region24: #{tpu_custom_call.1} parent=0 // pred_region
    _
  $region25: #{tpu_custom_call.1} parent=0 // pred_fallthru
    _
  // Predicated region
  $region26: #{tpu_custom_call.1} parent=0 // pred_check
    _
  $region27: #{tpu_custom_call.1} parent=0 // pred_check_branch
    %31 = sbr.rel (0) target = $region29
  $region28: #{tpu_custom_call.1} parent=0 // pred_region
    _
  $region29: #{tpu_custom_call.1} parent=0 // pred_fallthru
    _
  // Predicated region
  $region30: #{tpu_custom_call.1} parent=0 // pred_check
    _
  $region31: #{tpu_custom_call.1} parent=0 // pred_check_branch
    %33 = sbr.rel (0) target = $region33
  $region32: #{tpu_custom_call.1} parent=0 // pred_region
    _
  $region33: #{tpu_custom_call.1} parent=0 // pred_fallthru
    _
  // Predicated region
  $region34: #{tpu_custom_call.1} parent=0 // pred_check
    _
  $region35: #{tpu_custom_call.1} parent=0 // pred_check_branch
    %35 = sbr.rel (0) target = $region37
  $region36: #{tpu_custom_call.1} parent=0 // pred_region
    _
  $region37: #{tpu_custom_call.1} parent=0 // pred_fallthru
    _
  // Predicated region
  $region38: #{tpu_custom_call.1} parent=0 // pred_check
    _
  $region39: #{tpu_custom_call.1} parent=0 // pred_check_branch
    %37 = sbr.rel (0) target = $region41
  $region40: #{tpu_custom_call.1} parent=0 // pred_region
    _
  $region41: #{tpu_custom_call.1} parent=0 // pred_fallthru
    _
  // Predicated region
  $region42: #{tpu_custom_call.1} parent=0 // pred_check
    _
  $region43: #{tpu_custom_call.1} parent=0 // pred_check_branch
    %39 = sbr.rel (0) target = $region45
  $region44: #{tpu_custom_call.1} parent=0 // pred_region
    _
  $region45: #{tpu_custom_call.1} parent=0 // pred_fallthru
    _
  %v40 = vld [vmem:[%s1] sm:$0xff]
  %v41 = vld [vmem:[%s1 + $0x8] sm:$0xff]
  %v42 = vld [vmem:[%s3] sm:$0xff]
  %v43 = vld [vmem:[%s3 + $0x8] sm:$0xff]
  %v44 = vld [vmem:[%s5] sm:$0xff]
  %v45 = vld [vmem:[%s5 + $0x8] sm:$0xff]
  %v46 = vld [vmem:[%s5 + $0x10] sm:$0xff]
  %v47 = vld [vmem:[%s5 + $0x18] sm:$0xff]
  %v48 = vld [vmem:[%s5 + $0x20] sm:$0xff]
  %v49 = vld [vmem:[%s5 + $0x28] sm:$0xff]
  %v50 = vld [vmem:[%s5 + $0x30] sm:$0xff]
  %v51 = vld [vmem:[%s5 + $0x38] sm:$0xff]
  %v52 = vld [vmem:[%s7] sm:$0xff]
  %v53 = vld [vmem:[%s7 + $0x8] sm:$0xff]
  %v54 = vld [vmem:[%s7 + $0x10] sm:$0xff]
  %v55 = vld [vmem:[%s7 + $0x18] sm:$0xff]
  %v56 = vld [vmem:[%s9] sm:$0xff]
  %v57 = vld [vmem:[%s9 + $0x8] sm:$0xff]
  %v58 = vld [vmem:[%s9 + $0x10] sm:$0xff]
  %v59 = vld [vmem:[%s9 + $0x18] sm:$0xff]
  %v60 = vld [vmem:[%s2] sm:$0xff]
  %v61 = vld [vmem:[%s2 + $0x8] sm:$0xff]
  %v62 = vld [vmem:[%s4] sm:$0xff]
  %v63 = vld [vmem:[%s4 + $0x8] sm:$0xff]
  %v64 = vld [vmem:[%s6] sm:$0xff]
  %v65 = vld [vmem:[%s6 + $0x8] sm:$0xff]
  %v66 = vld [vmem:[%s6 + $0x10] sm:$0xff]
  %v67 = vld [vmem:[%s6 + $0x18] sm:$0xff]
  %v68 = vld [vmem:[%s6 + $0x20] sm:$0xff]
  %v69 = vld [vmem:[%s6 + $0x28] sm:$0xff]
  %v70 = vld [vmem:[%s6 + $0x30] sm:$0xff]
  %v71 = vld [vmem:[%s6 + $0x38] sm:$0xff]
  %v72 = vld [vmem:[%s8] sm:$0xff]
  %v73 = vld [vmem:[%s8 + $0x8] sm:$0xff]
  %v74 = vld [vmem:[%s8 + $0x10] sm:$0xff]
  %v75 = vld [vmem:[%s8 + $0x18] sm:$0xff]
  %v76 = vld [vmem:[%s10] sm:$0xff]
  %v77 = vld [vmem:[%s10 + $0x8] sm:$0xff]
  %v78 = vld [vmem:[%s10 + $0x10] sm:$0xff]
  %v79 = vld [vmem:[%s10 + $0x18] sm:$0xff]
  %v80 = vld [vmem:[%s0] sm:$0xff]
  %v81 = vld [vmem:[%s0 + $0x8] sm:$0xff]
  %83 = vset.pattern.permute.xlu0 0
  %84 = vperm.xlu0 %83, %v60
  %v85 = vpop.permute.xlu0 %84
  %88 = vset.pattern.permute.xlu0 0
  %89 = vperm.xlu0 %88, %v61
  %v90 = vpop.permute.xlu0 %89
  %vm92 = vcmask 130048
  %v94 = vsel %vm92, %v40, 0
  %v97 = vsel %vm92, %v41, 0
  %99 = vmatprep.subr.mxu0 0.0
  %100 = vmatpush1.msra.mxu0 %v80
  %101 = vmatprep.subr.mxu0 0.0
  %102 = vmatpush1.msra.mxu0 %v81
  %103 = vmatprep.subr.mxu0 0.0
  %104 = vmatpush1.msra.mxu0 0.0
  %105 = vmatprep.subr.mxu0 0.0
  %106 = vmatpush1.msra.mxu0 0.0
  %107 = vmatprep.subr.mxu0 0.0
  %108 = vmatpush1.msra.mxu0 0.0
  %109 = vmatprep.subr.mxu0 0.0
  %110 = vmatpush1.msra.mxu0 0.0
  %111 = vmatprep.subr.mxu0 0.0
  %112 = vmatpush1.msra.mxu0 0.0
  %113 = vmatprep.subr.mxu0 0.0
  %114 = vmatpush1.msra.mxu0 0.0
  %115 = vmatprep.subr.mxu0 0.0
  %116 = vmatpush1.msra.mxu0 0.0
  %117 = vmatprep.subr.mxu0 0.0
  %118 = vmatpush1.msra.mxu0 0.0
  %119 = vmatprep.subr.mxu0 0.0
  %120 = vmatpush1.msra.mxu0 0.0
  %121 = vmatprep.subr.mxu0 0.0
  %122 = vmatpush1.msra.mxu0 0.0
  %123 = vmatprep.subr.mxu0 0.0
  %124 = vmatpush1.msra.mxu0 0.0
  %125 = vmatprep.subr.mxu0 0.0
  %126 = vmatpush1.msra.mxu0 0.0
  %127 = vmatprep.subr.mxu0 0.0
  %128 = vmatpush1.msra.mxu0 0.0
  %129 = vmatprep.subr.mxu0 0.0
  %130 = vmatpush1.msra.mxu0 0.0
  %131 = vmatprep.subr.mxu0 0.0
  %132 = vmatpush1.msra.mxu0 0.0
  %133 = vmatprep.subr.mxu0 0.0
  %134 = vmatpush1.msra.mxu0 0.0
  %135 = vmatprep.subr.mxu0 0.0
  %136 = vmatpush1.msra.mxu0 0.0
  %137 = vmatprep.subr.mxu0 0.0
  %138 = vmatpush1.msra.mxu0 0.0
  %139 = vmatprep.subr.mxu0 0.0
  %140 = vmatpush1.msra.mxu0 0.0
  %141 = vmatprep.subr.mxu0 0.0
  %142 = vmatpush1.msra.mxu0 0.0
  %143 = vmatprep.subr.mxu0 0.0
  %144 = vmatpush1.msra.mxu0 0.0
  %145 = vmatprep.subr.mxu0 0.0
  %146 = vmatpush1.msra.mxu0 0.0
  %147 = vmatprep.subr.mxu0 0.0
  %148 = vmatpush1.msra.mxu0 0.0
  %149 = vmatprep.subr.mxu0 0.0
  %150 = vmatpush1.msra.mxu0 0.0
  %151 = vmatprep.subr.mxu0 0.0
  %152 = vmatpush1.msra.mxu0 0.0
  %153 = vmatprep.subr.mxu0 0.0
  %154 = vmatpush1.msra.mxu0 0.0
  %155 = vmatprep.subr.mxu0 0.0
  %156 = vmatpush1.msra.mxu0 0.0
  %157 = vmatprep.subr.mxu0 0.0
  %158 = vmatpush1.msra.mxu0 0.0
  %159 = vmatprep.subr.mxu0 0.0
  %160 = vmatpush1.msra.mxu0 0.0
  %161 = vmatprep.subr.mxu0 0.0
  %162 = vmatpush1.msra.mxu0 0.0
  %163 = vmatprep.mubr.f32.mxu0 0.0
  %164 = vmatmul.mubr.f32.gmra.mrb[0].mxu0 %v94
  %v165 = vpop.f32.mrb[0].mxu0
  %v166 = vadd.f32 %v85, %v165
  %v167 = vpop.f32.mrb[0].mxu0
  %168 = vmatprep.mubr.f32.mxu0 0.0
  %169 = vmatmul.mubr.f32.gmra.mrb[0].mxu0 %v97
  %v170 = vpop.f32.mrb[0].mxu0
  %v171 = vadd.f32 %v90, %v170
  %v172 = vpop.f32.mrb[0].mxu0
  %173 = vdwg.mxu0
  %v174 = vmax.f32 %v166, 0.0
  %v175 = vmax.f32 %v171, 0.0
  %177 = vset.pattern.permute.xlu0 0
  %178 = vperm.xlu0 %177, %v62
  %v179 = vpop.permute.xlu0 %178
  %182 = vset.pattern.permute.xlu0 0
  %183 = vperm.xlu0 %182, %v63
  %v184 = vpop.permute.xlu0 %183
  %v187 = vsel %vm92, %v42, 0
  %v190 = vsel %vm92, %v43, 0
  %192 = vmatprep.subr.mxu0 0.0
  %193 = vmatpush1.msra.mxu0 %v174
  %194 = vmatprep.subr.mxu0 0.0
  %195 = vmatpush1.msra.mxu0 %v175
  %196 = vmatprep.subr.mxu0 0.0
  %197 = vmatpush1.msra.mxu0 0.0
  %198 = vmatprep.subr.mxu0 0.0
  %199 = vmatpush1.msra.mxu0 0.0
  %200 = vmatprep.subr.mxu0 0.0
  %201 = vmatpush1.msra.mxu0 0.0
  %202 = vmatprep.subr.mxu0 0.0
  %203 = vmatpush1.msra.mxu0 0.0
  %204 = vmatprep.subr.mxu0 0.0
  %205 = vmatpush1.msra.mxu0 0.0
  %206 = vmatprep.subr.mxu0 0.0
  %207 = vmatpush1.msra.mxu0 0.0
  %208 = vmatprep.subr.mxu0 0.0
  %209 = vmatpush1.msra.mxu0 0.0
  %210 = vmatprep.subr.mxu0 0.0
  %211 = vmatpush1.msra.mxu0 0.0
  %212 = vmatprep.subr.mxu0 0.0
  %213 = vmatpush1.msra.mxu0 0.0
  %214 = vmatprep.subr.mxu0 0.0
  %215 = vmatpush1.msra.mxu0 0.0
  %216 = vmatprep.subr.mxu0 0.0
  %217 = vmatpush1.msra.mxu0 0.0
  %218 = vmatprep.subr.mxu0 0.0
  %219 = vmatpush1.msra.mxu0 0.0
  %220 = vmatprep.subr.mxu0 0.0
  %221 = vmatpush1.msra.mxu0 0.0
  %222 = vmatprep.subr.mxu0 0.0
  %223 = vmatpush1.msra.mxu0 0.0
  %224 = vmatprep.subr.mxu0 0.0
  %225 = vmatpush1.msra.mxu0 0.0
  %226 = vmatprep.subr.mxu0 0.0
  %227 = vmatpush1.msra.mxu0 0.0
  %228 = vmatprep.subr.mxu0 0.0
  %229 = vmatpush1.msra.mxu0 0.0
  %230 = vmatprep.subr.mxu0 0.0
  %231 = vmatpush1.msra.mxu0 0.0
  %232 = vmatprep.subr.mxu0 0.0
  %233 = vmatpush1.msra.mxu0 0.0
  %234 = vmatprep.subr.mxu0 0.0
  %235 = vmatpush1.msra.mxu0 0.0
  %236 = vmatprep.subr.mxu0 0.0
  %237 = vmatpush1.msra.mxu0 0.0
  %238 = vmatprep.subr.mxu0 0.0
  %239 = vmatpush1.msra.mxu0 0.0
  %240 = vmatprep.subr.mxu0 0.0
  %241 = vmatpush1.msra.mxu0 0.0
  %242 = vmatprep.subr.mxu0 0.0
  %243 = vmatpush1.msra.mxu0 0.0
  %244 = vmatprep.subr.mxu0 0.0
  %245 = vmatpush1.msra.mxu0 0.0
  %246 = vmatprep.subr.mxu0 0.0
  %247 = vmatpush1.msra.mxu0 0.0
  %248 = vmatprep.subr.mxu0 0.0
  %249 = vmatpush1.msra.mxu0 0.0
  %250 = vmatprep.subr.mxu0 0.0
  %251 = vmatpush1.msra.mxu0 0.0
  %252 = vmatprep.subr.mxu0 0.0
  %253 = vmatpush1.msra.mxu0 0.0
  %254 = vmatprep.subr.mxu0 0.0
  %255 = vmatpush1.msra.mxu0 0.0
  %256 = vmatprep.mubr.f32.mxu0 0.0
  %257 = vmatmul.mubr.f32.gmra.mrb[0].mxu0 %v187
  %v258 = vpop.f32.mrb[0].mxu0
  %v259 = vadd.f32 %v179, %v258
  %v260 = vpop.f32.mrb[0].mxu0
  %261 = vmatprep.mubr.f32.mxu0 0.0
  %262 = vmatmul.mubr.f32.gmra.mrb[0].mxu0 %v190
  %v263 = vpop.f32.mrb[0].mxu0
  %v264 = vadd.f32 %v184, %v263
  %v265 = vpop.f32.mrb[0].mxu0
  %266 = vdwg.mxu0
  %v267 = vadd.f32 %v259, %v80
  %v268 = vadd.f32 %v264, %v81
  %v269 = vmax.f32 %v267, 0.0
  %v270 = vmax.f32 %v268, 0.0
  %272 = vset.pattern.permute.xlu0 0
  %273 = vperm.xlu0 %272, %v64
  %v274 = vpop.permute.xlu0 %273
  %277 = vset.pattern.permute.xlu0 0
  %278 = vperm.xlu0 %277, %v65
  %v279 = vpop.permute.xlu0 %278
  %282 = vset.pattern.permute.xlu0 0
  %283 = vperm.xlu0 %282, %v66
  %v284 = vpop.permute.xlu0 %283
  %287 = vset.pattern.permute.xlu0 0
  %288 = vperm.xlu0 %287, %v67
  %v289 = vpop.permute.xlu0 %288
  %292 = vset.pattern.permute.xlu0 0
  %293 = vperm.xlu0 %292, %v68
  %v294 = vpop.permute.xlu0 %293
  %297 = vset.pattern.permute.xlu0 0
  %298 = vperm.xlu0 %297, %v69
  %v299 = vpop.permute.xlu0 %298
  %302 = vset.pattern.permute.xlu0 0
  %303 = vperm.xlu0 %302, %v70
  %v304 = vpop.permute.xlu0 %303
  %307 = vset.pattern.permute.xlu0 0
  %308 = vperm.xlu0 %307, %v71
  %v309 = vpop.permute.xlu0 %308
  %v312 = vsel %vm92, %v44, 0
  %v315 = vsel %vm92, %v45, 0
  %v318 = vsel %vm92, %v46, 0
  %v321 = vsel %vm92, %v47, 0
  %v324 = vsel %vm92, %v48, 0
  %v327 = vsel %vm92, %v49, 0
  %v330 = vsel %vm92, %v50, 0
  %v333 = vsel %vm92, %v51, 0
  %335 = vmatprep.subr.mxu0 0.0
  %336 = vmatpush1.msra.mxu0 %v269
  %337 = vmatprep.subr.mxu0 0.0
  %338 = vmatpush1.msra.mxu0 %v270
  %339 = vmatprep.subr.mxu0 0.0
  %340 = vmatpush1.msra.mxu0 0.0
  %341 = vmatprep.subr.mxu0 0.0
  %342 = vmatpush1.msra.mxu0 0.0
  %343 = vmatprep.subr.mxu0 0.0
  %344 = vmatpush1.msra.mxu0 0.0
  %345 = vmatprep.subr.mxu0 0.0
  %346 = vmatpush1.msra.mxu0 0.0
  %347 = vmatprep.subr.mxu0 0.0
  %348 = vmatpush1.msra.mxu0 0.0
  %349 = vmatprep.subr.mxu0 0.0
  %350 = vmatpush1.msra.mxu0 0.0
  %351 = vmatprep.subr.mxu0 0.0
  %352 = vmatpush1.msra.mxu0 0.0
  %353 = vmatprep.subr.mxu0 0.0
  %354 = vmatpush1.msra.mxu0 0.0
  %355 = vmatprep.subr.mxu0 0.0
  %356 = vmatpush1.msra.mxu0 0.0
  %357 = vmatprep.subr.mxu0 0.0
  %358 = vmatpush1.msra.mxu0 0.0
  %359 = vmatprep.subr.mxu0 0.0
  %360 = vmatpush1.msra.mxu0 0.0
  %361 = vmatprep.subr.mxu0 0.0
  %362 = vmatpush1.msra.mxu0 0.0
  %363 = vmatprep.subr.mxu0 0.0
  %364 = vmatpush1.msra.mxu0 0.0
  %365 = vmatprep.subr.mxu0 0.0
  %366 = vmatpush1.msra.mxu0 0.0
  %367 = vmatprep.subr.mxu0 0.0
  %368 = vmatpush1.msra.mxu0 0.0
  %369 = vmatprep.subr.mxu0 0.0
  %370 = vmatpush1.msra.mxu0 0.0
  %371 = vmatprep.subr.mxu0 0.0
  %372 = vmatpush1.msra.mxu0 0.0
  %373 = vmatprep.subr.mxu0 0.0
  %374 = vmatpush1.msra.mxu0 0.0
  %375 = vmatprep.subr.mxu0 0.0
  %376 = vmatpush1.msra.mxu0 0.0
  %377 = vmatprep.subr.mxu0 0.0
  %378 = vmatpush1.msra.mxu0 0.0
  %379 = vmatprep.subr.mxu0 0.0
  %380 = vmatpush1.msra.mxu0 0.0
  %381 = vmatprep.subr.mxu0 0.0
  %382 = vmatpush1.msra.mxu0 0.0
  %383 = vmatprep.subr.mxu0 0.0
  %384 = vmatpush1.msra.mxu0 0.0
  %385 = vmatprep.subr.mxu0 0.0
  %386 = vmatpush1.msra.mxu0 0.0
  %387 = vmatprep.subr.mxu0 0.0
  %388 = vmatpush1.msra.mxu0 0.0
  %389 = vmatprep.subr.mxu0 0.0
  %390 = vmatpush1.msra.mxu0 0.0
  %391 = vmatprep.subr.mxu0 0.0
  %392 = vmatpush1.msra.mxu0 0.0
  %393 = vmatprep.subr.mxu0 0.0
  %394 = vmatpush1.msra.mxu0 0.0
  %395 = vmatprep.subr.mxu0 0.0
  %396 = vmatpush1.msra.mxu0 0.0
  %397 = vmatprep.subr.mxu0 0.0
  %398 = vmatpush1.msra.mxu0 0.0
  %399 = vmatprep.mubr.f32.mxu0 0.0
  %400 = vmatmul.mubr.f32.gmra.mrb[0].mxu0 %v312
  %v401 = vpop.f32.mrb[0].mxu0
  %v402 = vadd.f32 %v274, %v401
  %v403 = vpop.f32.mrb[0].mxu0
  %404 = vmatprep.mubr.f32.mxu0 0.0
  %405 = vmatmul.mubr.f32.gmra.mrb[0].mxu0 %v315
  %v406 = vpop.f32.mrb[0].mxu0
  %v407 = vadd.f32 %v279, %v406
  %v408 = vpop.f32.mrb[0].mxu0
  %409 = vmatprep.mubr.f32.mxu0 0.0
  %410 = vmatmul.mubr.f32.gmra.mrb[0].mxu0 %v318
  %v411 = vpop.f32.mrb[0].mxu0
  %v412 = vadd.f32 %v284, %v411
  %v413 = vpop.f32.mrb[0].mxu0
  %414 = vmatprep.mubr.f32.mxu0 0.0
  %415 = vmatmul.mubr.f32.gmra.mrb[0].mxu0 %v321
  %v416 = vpop.f32.mrb[0].mxu0
  %v417 = vadd.f32 %v289, %v416
  %v418 = vpop.f32.mrb[0].mxu0
  %419 = vmatprep.mubr.f32.mxu0 0.0
  %420 = vmatmul.mubr.f32.gmra.mrb[0].mxu0 %v324
  %v421 = vpop.f32.mrb[0].mxu0
  %v422 = vadd.f32 %v294, %v421
  %v423 = vpop.f32.mrb[0].mxu0
  %424 = vmatprep.mubr.f32.mxu0 0.0
  %425 = vmatmul.mubr.f32.gmra.mrb[0].mxu0 %v327
  %v426 = vpop.f32.mrb[0].mxu0
  %v427 = vadd.f32 %v299, %v426
  %v428 = vpop.f32.mrb[0].mxu0
  %429 = vmatprep.mubr.f32.mxu0 0.0
  %430 = vmatmul.mubr.f32.gmra.mrb[0].mxu0 %v330
  %v431 = vpop.f32.mrb[0].mxu0
  %v432 = vadd.f32 %v304, %v431
  %v433 = vpop.f32.mrb[0].mxu0
  %434 = vmatprep.mubr.f32.mxu0 0.0
  %435 = vmatmul.mubr.f32.gmra.mrb[0].mxu0 %v333
  %v436 = vpop.f32.mrb[0].mxu0
  %v437 = vadd.f32 %v309, %v436
  %v438 = vpop.f32.mrb[0].mxu0
  %439 = vdwg.mxu0
  %v440 = vmax.f32 %v402, 0.0
  %v441 = vmax.f32 %v407, 0.0
  %v442 = vmax.f32 %v412, 0.0
  %v443 = vmax.f32 %v417, 0.0
  %445 = vset.pattern.permute.xlu0 0
  %446 = vperm.xlu0 %445, %v72
  %v447 = vpop.permute.xlu0 %446
  %450 = vset.pattern.permute.xlu0 0
  %451 = vperm.xlu0 %450, %v73
  %v452 = vpop.permute.xlu0 %451
  %455 = vset.pattern.permute.xlu0 0
  %456 = vperm.xlu0 %455, %v74
  %v457 = vpop.permute.xlu0 %456
  %460 = vset.pattern.permute.xlu0 0
  %461 = vperm.xlu0 %460, %v75
  %v462 = vpop.permute.xlu0 %461
  %vm464 = vcmask 261120
  %v466 = vsel %vm464, %v52, 0
  %v469 = vsel %vm464, %v53, 0
  %v472 = vsel %vm464, %v54, 0
  %v475 = vsel %vm464, %v55, 0
  %477 = vmatprep.subr.mxu0 0.0
  %478 = vmatpush1.msra.mxu0 %v440
  %479 = vmatprep.subr.mxu0 0.0
  %480 = vmatpush1.msra.mxu0 %v441
  %481 = vmatprep.subr.mxu0 0.0
  %482 = vmatpush1.msra.mxu0 %v442
  %483 = vmatprep.subr.mxu0 0.0
  %484 = vmatpush1.msra.mxu0 %v443
  %485 = vmatprep.subr.mxu0 0.0
  %486 = vmatpush1.msra.mxu0 0.0
  %487 = vmatprep.subr.mxu0 0.0
  %488 = vmatpush1.msra.mxu0 0.0
  %489 = vmatprep.subr.mxu0 0.0
  %490 = vmatpush1.msra.mxu0 0.0
  %491 = vmatprep.subr.mxu0 0.0
  %492 = vmatpush1.msra.mxu0 0.0
  %493 = vmatprep.subr.mxu0 0.0
  %494 = vmatpush1.msra.mxu0 0.0
  %495 = vmatprep.subr.mxu0 0.0
  %496 = vmatpush1.msra.mxu0 0.0
  %497 = vmatprep.subr.mxu0 0.0
  %498 = vmatpush1.msra.mxu0 0.0
  %499 = vmatprep.subr.mxu0 0.0
  %500 = vmatpush1.msra.mxu0 0.0
  %501 = vmatprep.subr.mxu0 0.0
  %502 = vmatpush1.msra.mxu0 0.0
  %503 = vmatprep.subr.mxu0 0.0
  %504 = vmatpush1.msra.mxu0 0.0
  %505 = vmatprep.subr.mxu0 0.0
  %506 = vmatpush1.msra.mxu0 0.0
  %507 = vmatprep.subr.mxu0 0.0
  %508 = vmatpush1.msra.mxu0 0.0
  %509 = vmatprep.subr.mxu0 0.0
  %510 = vmatpush1.msra.mxu0 0.0
  %511 = vmatprep.subr.mxu0 0.0
  %512 = vmatpush1.msra.mxu0 0.0
  %513 = vmatprep.subr.mxu0 0.0
  %514 = vmatpush1.msra.mxu0 0.0
  %515 = vmatprep.subr.mxu0 0.0
  %516 = vmatpush1.msra.mxu0 0.0
  %517 = vmatprep.subr.mxu0 0.0
  %518 = vmatpush1.msra.mxu0 0.0
  %519 = vmatprep.subr.mxu0 0.0
  %520 = vmatpush1.msra.mxu0 0.0
  %521 = vmatprep.subr.mxu0 0.0
  %522 = vmatpush1.msra.mxu0 0.0
  %523 = vmatprep.subr.mxu0 0.0
  %524 = vmatpush1.msra.mxu0 0.0
  %525 = vmatprep.subr.mxu0 0.0
  %526 = vmatpush1.msra.mxu0 0.0
  %527 = vmatprep.subr.mxu0 0.0
  %528 = vmatpush1.msra.mxu0 0.0
  %529 = vmatprep.subr.mxu0 0.0
  %530 = vmatpush1.msra.mxu0 0.0
  %531 = vmatprep.subr.mxu0 0.0
  %532 = vmatpush1.msra.mxu0 0.0
  %533 = vmatprep.subr.mxu0 0.0
  %534 = vmatpush1.msra.mxu0 0.0
  %535 = vmatprep.subr.mxu0 0.0
  %536 = vmatpush1.msra.mxu0 0.0
  %537 = vmatprep.subr.mxu0 0.0
  %538 = vmatpush1.msra.mxu0 0.0
  %539 = vmatprep.subr.mxu0 0.0
  %540 = vmatpush1.msra.mxu0 0.0
  %541 = vmatprep.mubr.f32.mxu0 0.0
  %542 = vmatmul.mubr.f32.gmra.mrb[0].mxu0 %v466
  %v543 = vpop.f32.mrb[0].mxu0
  %v544 = vadd.f32 %v447, %v543
  %v545 = vpop.f32.mrb[0].mxu0
  %546 = vmatprep.mubr.f32.mxu0 0.0
  %547 = vmatmul.mubr.f32.gmra.mrb[0].mxu0 %v469
  %v548 = vpop.f32.mrb[0].mxu0
  %v549 = vadd.f32 %v452, %v548
  %v550 = vpop.f32.mrb[0].mxu0
  %551 = vmatprep.mubr.f32.mxu0 0.0
  %552 = vmatmul.mubr.f32.gmra.mrb[0].mxu0 %v472
  %v553 = vpop.f32.mrb[0].mxu0
  %v554 = vadd.f32 %v457, %v553
  %v555 = vpop.f32.mrb[0].mxu0
  %556 = vmatprep.mubr.f32.mxu0 0.0
  %557 = vmatmul.mubr.f32.gmra.mrb[0].mxu0 %v475
  %v558 = vpop.f32.mrb[0].mxu0
  %v559 = vadd.f32 %v462, %v558
  %v560 = vpop.f32.mrb[0].mxu0
  %561 = vdwg.mxu0
  %v562 = vadd.f32 %v544, %v422
  %v563 = vadd.f32 %v549, %v427
  %v564 = vadd.f32 %v554, %v432
  %v565 = vadd.f32 %v559, %v437
  %v566 = vmax.f32 %v562, 0.0
  %v567 = vmax.f32 %v563, 0.0
  %v568 = vmax.f32 %v564, 0.0
  %v569 = vmax.f32 %v565, 0.0
  %571 = vset.pattern.permute.xlu0 0
  %572 = vperm.xlu0 %571, %v76
  %v573 = vpop.permute.xlu0 %572
  %576 = vset.pattern.permute.xlu0 0
  %577 = vperm.xlu0 %576, %v77
  %v578 = vpop.permute.xlu0 %577
  %581 = vset.pattern.permute.xlu0 0
  %582 = vperm.xlu0 %581, %v78
  %v583 = vpop.permute.xlu0 %582
  %586 = vset.pattern.permute.xlu0 0
  %587 = vperm.xlu0 %586, %v79
  %v588 = vpop.permute.xlu0 %587
  %v591 = vsel %vm464, %v56, 0
  %v594 = vsel %vm464, %v57, 0
  %v597 = vsel %vm464, %v58, 0
  %v600 = vsel %vm464, %v59, 0
  %602 = vmatprep.subr.mxu0 0.0
  %603 = vmatpush1.msra.mxu0 %v566
  %604 = vmatprep.subr.mxu0 0.0
  %605 = vmatpush1.msra.mxu0 %v567
  %606 = vmatprep.subr.mxu0 0.0
  %607 = vmatpush1.msra.mxu0 %v568
  %608 = vmatprep.subr.mxu0 0.0
  %609 = vmatpush1.msra.mxu0 %v569
  %610 = vmatprep.subr.mxu0 0.0
  %611 = vmatpush1.msra.mxu0 0.0
  %612 = vmatprep.subr.mxu0 0.0
  %613 = vmatpush1.msra.mxu0 0.0
  %614 = vmatprep.subr.mxu0 0.0
  %615 = vmatpush1.msra.mxu0 0.0
  %616 = vmatprep.subr.mxu0 0.0
  %617 = vmatpush1.msra.mxu0 0.0
  %618 = vmatprep.subr.mxu0 0.0
  %619 = vmatpush1.msra.mxu0 0.0
  %620 = vmatprep.subr.mxu0 0.0
  %621 = vmatpush1.msra.mxu0 0.0
  %622 = vmatprep.subr.mxu0 0.0
  %623 = vmatpush1.msra.mxu0 0.0
  %624 = vmatprep.subr.mxu0 0.0
  %625 = vmatpush1.msra.mxu0 0.0
  %626 = vmatprep.subr.mxu0 0.0
  %627 = vmatpush1.msra.mxu0 0.0
  %628 = vmatprep.subr.mxu0 0.0
  %629 = vmatpush1.msra.mxu0 0.0
  %630 = vmatprep.subr.mxu0 0.0
  %631 = vmatpush1.msra.mxu0 0.0
  %632 = vmatprep.subr.mxu0 0.0
  %633 = vmatpush1.msra.mxu0 0.0
  %634 = vmatprep.subr.mxu0 0.0
  %635 = vmatpush1.msra.mxu0 0.0
  %636 = vmatprep.subr.mxu0 0.0
  %637 = vmatpush1.msra.mxu0 0.0
  %638 = vmatprep.subr.mxu0 0.0
  %639 = vmatpush1.msra.mxu0 0.0
  %640 = vmatprep.subr.mxu0 0.0
  %641 = vmatpush1.msra.mxu0 0.0
  %642 = vmatprep.subr.mxu0 0.0
  %643 = vmatpush1.msra.mxu0 0.0
  %644 = vmatprep.subr.mxu0 0.0
  %645 = vmatpush1.msra.mxu0 0.0
  %646 = vmatprep.subr.mxu0 0.0
  %647 = vmatpush1.msra.mxu0 0.0
  %648 = vmatprep.subr.mxu0 0.0
  %649 = vmatpush1.msra.mxu0 0.0
  %650 = vmatprep.subr.mxu0 0.0
  %651 = vmatpush1.msra.mxu0 0.0
  %652 = vmatprep.subr.mxu0 0.0
  %653 = vmatpush1.msra.mxu0 0.0
  %654 = vmatprep.subr.mxu0 0.0
  %655 = vmatpush1.msra.mxu0 0.0
  %656 = vmatprep.subr.mxu0 0.0
  %657 = vmatpush1.msra.mxu0 0.0
  %658 = vmatprep.subr.mxu0 0.0
  %659 = vmatpush1.msra.mxu0 0.0
  %660 = vmatprep.subr.mxu0 0.0
  %661 = vmatpush1.msra.mxu0 0.0
  %662 = vmatprep.subr.mxu0 0.0
  %663 = vmatpush1.msra.mxu0 0.0
  %664 = vmatprep.subr.mxu0 0.0
  %665 = vmatpush1.msra.mxu0 0.0
  %666 = vmatprep.mubr.f32.mxu0 0.0
  %667 = vmatmul.mubr.f32.gmra.mrb[0].mxu0 %v591
  %v668 = vpop.f32.mrb[0].mxu0
  %v669 = vadd.f32 %v573, %v668
  %v670 = vpop.f32.mrb[0].mxu0
  %671 = vmatprep.mubr.f32.mxu0 0.0
  %672 = vmatmul.mubr.f32.gmra.mrb[0].mxu0 %v594
  %v673 = vpop.f32.mrb[0].mxu0
  %v674 = vadd.f32 %v578, %v673
  %v675 = vpop.f32.mrb[0].mxu0
  %676 = vmatprep.mubr.f32.mxu0 0.0
  %677 = vmatmul.mubr.f32.gmra.mrb[0].mxu0 %v597
  %v678 = vpop.f32.mrb[0].mxu0
  %v679 = vadd.f32 %v583, %v678
  %v680 = vpop.f32.mrb[0].mxu0
  %681 = vmatprep.mubr.f32.mxu0 0.0
  %682 = vmatmul.mubr.f32.gmra.mrb[0].mxu0 %v600
  %v683 = vpop.f32.mrb[0].mxu0
  %v684 = vadd.f32 %v588, %v683
  %v685 = vpop.f32.mrb[0].mxu0
  %686 = vdwg.mxu0
  %687 = vst [vmem:[%s11] sm:$0xff] %v669
  %688 = vst [vmem:[%s11 + $0x8] sm:$0xff] %v674
  %689 = vst [vmem:[%s11 + $0x10] sm:$0xff] %v679
  %690 = vst [vmem:[%s11 + $0x18] sm:$0xff] %v684
  %v691 = vmax.f32 %v669, 0.0
  %v692 = vmax.f32 %v674, 0.0
  %v693 = vmax.f32 %v679, 0.0
  %v694 = vmax.f32 %v684, 0.0
  %695 = vst [vmem:[%s12] sm:$0xff] %v691
  %696 = vst [vmem:[%s12 + $0x8] sm:$0xff] %v692
  %697 = vst [vmem:[%s12 + $0x10] sm:$0xff] %v693
  %698 = vst [vmem:[%s12 + $0x18] sm:$0xff] %v694
  // Predicated region
  $region46: #{tpu_custom_call.1} parent=0 // pred_check
    _
  $region47: #{tpu_custom_call.1} parent=0 // pred_check_branch
    %700 = sbr.rel (0) target = $region49
  $region48: #{tpu_custom_call.1} parent=0 // pred_region
    _
  $region49: #{tpu_custom_call.1} parent=0 // pred_fallthru
    _
  // Predicated region
  $region50: #{tpu_custom_call.1} parent=0 // pred_check
    _
  $region51: #{tpu_custom_call.1} parent=0 // pred_check_branch
    %702 = sbr.rel (0) target = $region53
  $region52: #{tpu_custom_call.1} parent=0 // pred_region
    _
  $region53: #{tpu_custom_call.1} parent=0 // pred_fallthru
    _
  // Predicated region
  $region54: #{tpu_custom_call.1} parent=0 // pred_check
    _
  $region55: #{tpu_custom_call.1} parent=0 // pred_check_branch
    %704 = sbr.rel (0) target = $region57
  $region56: #{tpu_custom_call.1} parent=0 // pred_region
    _
  $region57: #{tpu_custom_call.1} parent=0 // pred_fallthru
    _
  // Predicated region
  $region58: #{tpu_custom_call.1} parent=0 // pred_check
    _
  $region59: #{tpu_custom_call.1} parent=0 // pred_check_branch
    %706 = sbr.rel (0) target = $region61
  $region60: #{tpu_custom_call.1} parent=0 // pred_region
    _
  $region61: #{tpu_custom_call.1} parent=0 // pred_fallthru
    _

</llo_original>
